<compile_context>
chip_gen: v6e
topology: v6e:2x2x1
jax: 0.10.0
libtpu: 0.0.40
codegen_flags: <defaults>
</compile_context>

<pallas_src>
import jax
import jax.numpy as jnp
from jax.experimental import pallas as pl
from jax.experimental.pallas import tpu as pltpu


def cross_conv_kernel(x_ref, a_ref, b_ref, o_ref):
    """One (batch-tile, channel-tile) block of CrossConv, channel-last.

    x_ref: [TB, V, H, TC]  input block (original layout, channels on lanes)
    a_ref: [H, TC]         alpha[:, :, 0].T channel tile
    b_ref: [V, TC]         beta[:, 0, :].T  channel tile
    o_ref: [TB, V, H, TC]  output block
    """
    x = x_ref[...]          # keep input dtype: no full-tile f32 cast sweep
    a = a_ref[...]
    b = b_ref[...]
    # hor[n, i, c] = sum_j x[n, i, j, c] * alpha[c, j]  (sublane reduce, f32 acc)
    hor = jnp.sum(x * a[None, None, :, :], axis=2, dtype=jnp.float32)   # [TB, V, TC]
    # ver[n, j, c] = sum_i beta[c, i] * x[n, i, j, c]   (cross-vreg adds, f32 acc)
    ver = jnp.sum(x * b[None, :, None, :], axis=1, dtype=jnp.float32)   # [TB, H, TC]
    # out[n, i, j, c] = hor[n, i, c] * ver[n, j, c]     (rank-1 outer product)
    o_ref[...] = (hor[:, :, None, :] * ver[:, None, :, :]).astype(o_ref.dtype)


def _vmem_capacity_bytes():
    """Per-core VMEM capacity; conservative (v7x-sized) fallback."""
    try:
        return int(pltpu.get_tpu_info().vmem_capacity_bytes)
    except Exception:
        return 64 << 20


def _pick_tiles(B, V, H, C, itemsize, block_budget):
    """Pick (tb, tc): tb | B, tc | C with tc a multiple of 128, maximizing the
    per-step x/out block size under `block_budget` bytes.  Also tries to leave
    at least 2 grid steps so both TensorCores get work on v7x."""
    tcs = [t for t in range(128, C + 1, 128) if C % t == 0]
    if not tcs:                       # only if caller forced the Pallas path
        return 1, C
    best_tb, best_tc, best_bytes = 1, tcs[0], 0
    for tc in tcs:
        base = V * H * tc * itemsize
        tb = max((d for d in range(1, B + 1)
                  if B % d == 0 and d * base <= block_budget), default=0)
        if tb == 0:
            continue
        if tb * base > best_bytes:
            best_tb, best_tc, best_bytes = tb, tc, tb * base
    tb, tc = best_tb, best_tc
    # Megacore (v7x): avoid a 1-step grid when we can split something.
    if (B // tb) * (C // tc) == 1:
        if B >= 2:
            tb = max(d for d in range(1, B) if B % d == 0)
        elif len(tcs) >= 2:
            tc = tcs[-2]
    return tb, tc


def cross_conv_ref(matrix_tensor, alpha, beta):
    """Pure-JAX reference mirroring the PyTorch forward exactly."""
    xp = jnp.transpose(matrix_tensor, (0, 3, 1, 2))  # [B, C, V, H]
    hor = jnp.matmul(xp, alpha)                      # [B, C, V, 1]
    ver = jnp.matmul(beta, xp)                       # [B, C, 1, H]
    return jnp.transpose(jnp.matmul(hor, ver), (0, 2, 3, 1))


def cross_conv(matrix_tensor, alpha, beta, *, tiles=None, use_pallas=None):
    """matrix_tensor: [B, V, H, C]; alpha: [C, H, 1]; beta: [C, 1, V].

    Returns [B, V, H, C], matching CrossConv.forward.
    """
    B, V, H, C = matrix_tensor.shape
    assert alpha.shape == (C, H, 1) and beta.shape == (C, 1, V)

    if use_pallas is None:
        # Lane-dense stores need C % 128 == 0; for tiny / unaligned channel
        # dims XLA's fused elementwise path wins anyway.
        use_pallas = (C >= 128) and (C % 128 == 0)
    if not use_pallas:
        return cross_conv_ref(matrix_tensor, alpha, beta)

    x_dtype = matrix_tensor.dtype
    # Channel-last parameter tiles (tiny HBM traffic).  Cast to the activation
    # dtype so the full-tile multiplies run in the input dtype (bf16 VALU on
    # v6e/v7x); reductions still accumulate in f32 inside the kernel.
    a = jnp.transpose(alpha[:, :, 0], (1, 0)).astype(x_dtype)   # [H, C]
    b = jnp.transpose(beta[:, 0, :], (1, 0)).astype(x_dtype)    # [V, C]

    itemsize = jnp.dtype(x_dtype).itemsize
    vmem_cap = _vmem_capacity_bytes()
    # Per-step x/out block budget.  Live VMEM ~ 2*(x block) + 2*(out block)
    # (double buffered) + a few full-tile f32 temporaries, so keep the block a
    # small fraction of capacity (≈2.6 MiB on v7x, 4 MiB on v5e/v6e).
    block_budget = max(512 << 10, min(4 << 20, vmem_cap // 24))
    vmem_limit = int(min(vmem_cap // 2, 64 << 20))

    if tiles is None:
        tb, tc = _pick_tiles(B, V, H, C, itemsize, block_budget)
    else:
        tb, tc = tiles
    assert B % tb == 0 and C % tc == 0 and tc % 128 == 0, (B, tb, C, tc)
    nbt, nct = B // tb, C // tc

    # Grid order: channel tiles outermost keeps the tiny alpha/beta tiles
    # VMEM-resident across the inner batch sweep (same block index on
    # consecutive steps -> param DMA skipped).  If batch has more tiles, put it
    # first for balanced megacore sharding on v7x (params are tiny anyway).
    if nct >= nbt:
        grid = (nct, nbt)
        x_map = lambda ci, bi: (bi, 0, 0, ci)
        ab_map = lambda ci, bi: (0, ci)
    else:
        grid = (nbt, nct)
        x_map = lambda bi, ci: (bi, 0, 0, ci)
        ab_map = lambda bi, ci: (0, ci)

    cost = pl.CostEstimate(
        flops=5 * B * V * H * C,
        transcendentals=0,
        bytes_accessed=(B * V * H * C * itemsize          # read x
                        + B * V * H * C * itemsize        # write out
                        + (C * H + C * V) * itemsize),    # params
    )

    return pl.pallas_call(
        cross_conv_kernel,
        out_shape=jax.ShapeDtypeStruct((B, V, H, C), x_dtype),
        grid_spec=pltpu.PrefetchScalarGridSpec(
            num_scalar_prefetch=0,
            grid=grid,
            in_specs=[
                pl.BlockSpec((tb, V, H, tc), x_map),
                pl.BlockSpec((H, tc), ab_map),
                pl.BlockSpec((V, tc), ab_map),
            ],
            out_specs=pl.BlockSpec((tb, V, H, tc), x_map),
        ),
        compiler_params=pltpu.CompilerParams(
            dimension_semantics=("parallel", "parallel"),
            vmem_limit_bytes=vmem_limit),
        cost_estimate=cost,
    )(matrix_tensor, a, b)


if __name__ == "__main__":
    def check(x, alpha, beta, **kw):
        out = jax.block_until_ready(cross_conv(x, alpha, beta, **kw))
        ref = cross_conv_ref(x, alpha, beta)
        assert out.shape == ref.shape and out.dtype == x.dtype
        err = float(jnp.max(jnp.abs(out - ref)))
        assert jnp.allclose(out, ref, atol=1e-4, rtol=1e-4), err
        return out

    # Case 1: small module-consistent shapes on the Pallas path
    # (single 128-lane channel tile, batch split into 2 grid steps).
    B, V, H, C = 2, 16, 16, 128
    kx, ka, kb = jax.random.split(jax.random.PRNGKey(0), 3)
    alpha = jax.random.normal(ka, (C, H, 1), dtype=jnp.float32)
    beta = jax.random.normal(kb, (C, 1, V), dtype=jnp.float32)
    x = jax.random.normal(kx, (B, V, H, C), dtype=jnp.float32)
    check(x, alpha, beta)

    # Case 2: wider channels, forced (batch-tile, channel-tile) = (2, 128) to
    # exercise the 2x2 grid with the channel axis outermost.
    B2, V2, H2, C2 = 4, 8, 8, 256
    kx2, ka2, kb2 = jax.random.split(jax.random.PRNGKey(1), 3)
    alpha2 = jax.random.normal(ka2, (C2, H2, 1), dtype=jnp.float32)
    beta2 = jax.random.normal(kb2, (C2, 1, V2), dtype=jnp.float32)
    x2 = jax.random.normal(kx2, (B2, V2, H2, C2), dtype=jnp.float32)
    check(x2, alpha2, beta2, tiles=(2, 128))

    # Case 3: tiny / non-128-aligned channel dim auto-dispatches to the fused
    # XLA reference path.
    B3, V3, H3, C3 = 2, 16, 16, 8
    kx3, ka3, kb3 = jax.random.split(jax.random.PRNGKey(2), 3)
    alpha3 = jax.random.normal(ka3, (C3, H3, 1), dtype=jnp.float32)
    beta3 = jax.random.normal(kb3, (C3, 1, V3), dtype=jnp.float32)
    x3 = jax.random.normal(kx3, (B3, V3, H3, C3), dtype=jnp.float32)
    check(x3, alpha3, beta3)

    print("KERNEL_OK")
</pallas_src>

<mosaic_0001>
module attributes {stable_mosaic.version = 11 : i64} {
  func.func @cross_conv_kernel(%arg0: i32, %arg1: i32, %arg2: memref<1x16x16x128xf32, #tpu.memory_space<vmem>>, %arg3: memref<16x128xf32, #tpu.memory_space<vmem>>, %arg4: memref<16x128xf32, #tpu.memory_space<vmem>>, %arg5: memref<1x16x16x128xf32, #tpu.memory_space<vmem>>) attributes {dimension_semantics = [#tpu.dimension_semantics<parallel>, #tpu.dimension_semantics<parallel>], iteration_bounds = array<i64: 2, 1>, scalar_prefetch = 0 : i64, scratch_operands = 0 : i64, tpu.core_type = #tpu.core_type<tc>, window_params = [{transform_indices = @transform_0, window_bounds = array<i64: 1, 16, 16, 128>}, {transform_indices = @transform_1, window_bounds = array<i64: 16, 128>}, {transform_indices = @transform_2, window_bounds = array<i64: 16, 128>}, {transform_indices = @transform_3, window_bounds = array<i64: 1, 16, 16, 128>}]} {
    %c0 = arith.constant 0 : index
    %c0_0 = arith.constant 0 : index
    %c0_1 = arith.constant 0 : index
    %c0_2 = arith.constant 0 : index
    %0 = vector.load %arg2[%c0, %c0_0, %c0_1, %c0_2] : memref<1x16x16x128xf32, #tpu.memory_space<vmem>>, vector<1x16x16x128xf32>
    %c0_3 = arith.constant 0 : index
    %c0_4 = arith.constant 0 : index
    %1 = vector.load %arg3[%c0_3, %c0_4] : memref<16x128xf32, #tpu.memory_space<vmem>>, vector<16x128xf32>
    %c0_5 = arith.constant 0 : index
    %c0_6 = arith.constant 0 : index
    %2 = vector.load %arg4[%c0_5, %c0_6] : memref<16x128xf32, #tpu.memory_space<vmem>>, vector<16x128xf32>
    %3 = vector.shape_cast %1 : vector<16x128xf32> to vector<1x1x16x128xf32>
    %4 = vector.broadcast %3 : vector<1x1x16x128xf32> to vector<1x16x16x128xf32>
    %5 = arith.mulf %0, %4 : vector<1x16x16x128xf32>
    %cst = arith.constant dense<0.000000e+00> : vector<1x16x128xf32>
    %6 = vector.multi_reduction <add>, %5, %cst [2] : vector<1x16x16x128xf32> to vector<1x16x128xf32>
    %7 = vector.shape_cast %2 : vector<16x128xf32> to vector<1x16x1x128xf32>
    %8 = vector.broadcast %7 : vector<1x16x1x128xf32> to vector<1x16x16x128xf32>
    %9 = arith.mulf %0, %8 : vector<1x16x16x128xf32>
    %cst_7 = arith.constant dense<0.000000e+00> : vector<1x16x128xf32>
    %10 = vector.multi_reduction <add>, %9, %cst_7 [1] : vector<1x16x16x128xf32> to vector<1x16x128xf32>
    %11 = vector.shape_cast %6 : vector<1x16x128xf32> to vector<1x16x1x128xf32>
    %12 = vector.shape_cast %10 : vector<1x16x128xf32> to vector<1x1x16x128xf32>
    %13 = vector.broadcast %11 : vector<1x16x1x128xf32> to vector<1x16x16x128xf32>
    %14 = vector.broadcast %12 : vector<1x1x16x128xf32> to vector<1x16x16x128xf32>
    %15 = arith.mulf %13, %14 : vector<1x16x16x128xf32>
    %c0_8 = arith.constant 0 : index
    %c0_9 = arith.constant 0 : index
    %c0_10 = arith.constant 0 : index
    %c0_11 = arith.constant 0 : index
    %16 = vector.load %arg5[%c0_8, %c0_9, %c0_10, %c0_11] : memref<1x16x16x128xf32, #tpu.memory_space<vmem>>, vector<1x16x16x128xf32>
    tpu.vector_store %arg5[%c0_8, %c0_9, %c0_10, %c0_11], %15 {strides = array<i32>} : memref<1x16x16x128xf32, #tpu.memory_space<vmem>>, vector<1x16x16x128xf32>,
    return
  }
  func.func @transform_0(%arg0: i32, %arg1: i32) -> (i32, i32, i32, i32) {
    %c0_i32 = arith.constant 0 : i32
    %c0_i32_0 = arith.constant 0 : i32
    %c0_i32_1 = arith.constant 0 : i32
    return %arg0, %c0_i32, %c0_i32_0, %arg1 : i32, i32, i32, i32
  }
  func.func @transform_1(%arg0: i32, %arg1: i32) -> (i32, i32) {
    %c0_i32 = arith.constant 0 : i32
    %c0_i32_0 = arith.constant 0 : i32
    return %c0_i32, %arg1 : i32, i32
  }
  func.func @transform_2(%arg0: i32, %arg1: i32) -> (i32, i32) {
    %c0_i32 = arith.constant 0 : i32
    %c0_i32_0 = arith.constant 0 : i32
    return %c0_i32, %arg1 : i32, i32
  }
  func.func @transform_3(%arg0: i32, %arg1: i32) -> (i32, i32, i32, i32) {
    %c0_i32 = arith.constant 0 : i32
    %c0_i32_0 = arith.constant 0 : i32
    %c0_i32_1 = arith.constant 0 : i32
    return %arg0, %c0_i32, %c0_i32_0, %arg1 : i32, i32, i32, i32
  }
}

</mosaic_0001>

<llo_original>
// kernel: tpu_custom_call.1
$region0: #{tpu_custom_call.1}
  #allocation0 [shape = 'u32[]', space=smem, size = 0x4, offset = 0x4, fixed_abs, tag = 'smem constant byte address 0x4 - core index']
  #allocation1 [shape = 'u32[144,128]{1,0:T(1,128)}', space=vmem, size = 0x12000, scoped, tag = 'internal scratch']
  %s0 = inlined_call_operand.hbm [shape: f32[2,16,16,128], index: 0, kind: input, shape index: {}]
  %s1 = inlined_call_operand.hbm [shape: f32[16,128], index: 1, kind: input, shape index: {}]
  %s2 = inlined_call_operand.hbm [shape: f32[16,128], index: 2, kind: input, shape index: {}]
  %s3 = inlined_call_operand.hbm [shape: f32[2,16,16,128], index: 3, kind: output, shape index: {}]
  %s4 = sld [smem:[#allocation0]]
  $region57: #{tpu_custom_call.1} parent=0
    _
  %s6 = ssub.s32 1, %s4
  %s7 = scalar_select 0, %s6, %s4
  $region1: #{tpu_custom_call.1} parent=0
    #allocation2 [shape = 'u8[262144]{0}', space=vmem, size = 0x40000, scoped, tag = 'input window, operand 0']
    #allocation3 [shape = 's32[2]{0}', space=sflag, size = 0x8, scoped, tag = 'scoped memory for tpu_custom_call.1']
    #allocation4 [shape = 's32[2]{0}', space=sflag, size = 0x8, scoped, tag = 'scoped memory for tpu_custom_call.1']
    #allocation5 [shape = 'u8[8192]{0}', space=vmem, size = 0x2000, scoped, tag = 'input window, operand 1, single buffered']
    #allocation6 [shape = 's32[1]{0}', space=sflag, size = 0x4, scoped, tag = 'scoped memory for tpu_custom_call.1']
    #allocation7 [shape = 'u8[8192]{0}', space=vmem, size = 0x2000, scoped, tag = 'input window, operand 2, single buffered']
    #allocation8 [shape = 'u8[262144]{0}', space=vmem, size = 0x40000, scoped, tag = 'output window, operand 0']
    %8 = vsyncpa [#allocation3], 0
    %s9 = scalar_lea.sflag [#allocation3], 1
    %10 = vsyncpa %s9, 0
    %11 = vsyncpa [#allocation6], 0
    %12 = vsyncpa [#allocation4], 0
    %s13 = scalar_lea.sflag [#allocation4], 1
    %14 = vsyncpa %s13, 0
    loop: start=0, step=1, limit=4
    $region2: #{tpu_custom_call.1} parent=1 // loop_pre_header
      _
    $region3: #{tpu_custom_call.1} parent=1 // loop_header
      %s16 = sphi 0, %s20
      %p17 = scmp.ge.s32.totalorder %s16, 4
      %s23 = sphi 0, %s35
      %s24 = sphi 0, %s31
      %s25 = sphi 0, %s23
      %s26 = sphi 0, %s24
      %s27 = sphi 0, %s25
      %s28 = sphi 0, %s26
      %s40 = sphi 0, %s42
      %s43 = sphi 0, %s40
      %s44 = sphi 0, %s43
      %s60 = sphi 0, %s44
      %s66 = sphi 0, %s68
      %s69 = sphi 0, %s66
      %s70 = sphi 0, %s69
      %s86 = sphi 0, %s70
      %s92 = sphi 0, %s94
      %s95 = sphi 0, %s92
      %s96 = sphi 0, %s95
      %s112 = sphi 0, %s96
      %s120 = sphi 0, %s122
      %s123 = sphi 0, %s120
      %s124 = sphi 0, %s123
      %s140 = sphi 0, %s124
    $region4: #{tpu_custom_call.1} parent=1 // loop_header_branch
      %19 = sbr.rel (%p17) target = $region8
    $region5: #{tpu_custom_call.1} parent=1 // loop_body
      %s21 = ssub.s32 %s16, 1
      %s22 = ssub.s32 %s16, 2
      %s29 = sadd.s32 1, %s24
      %p30 = scmp.ge.s32.totalorder %s29, 1
      %s31 = scalar_select %p30, 0, %s29
      %s32 = sadd.s32 1, %s23
      %s33 = scalar_select %p30, %s32, %s23
      %p34 = scmp.ge.s32.totalorder %s33, 2
      %s35 = scalar_select %p34, 0, %s33
      %s36 = ssub.s32 %s23, %s35
      %s37 = ssub.s32 %s24, %s31
      %s38 = sor.u32 %s36, %s37
      %p39 = scmp.eq.s32.totalorder %s38, 0
      %s41 = sadd.s32 %s40, 1
      %s42 = scalar_select %p39, %s40, %s41
      %p45 = pneg %p39
      %p46 = scmp.eq.s32.totalorder %s16, 1
      %p47 = por %p45, %p46
      %p48 = scmp.ne.s32.totalorder %s40, %s43
      %p49 = scmp.eq.s32.totalorder %s16, 0
      %p50 = por %p48, %p49
      %p51 = scmp.ne.s32.totalorder %s40, %s43
      %p52 = scmp.eq.s32.totalorder %s21, 1
      %p53 = por %p51, %p52
      %p54 = scmp.ne.s32.totalorder %s43, %s44
      %p55 = scmp.eq.s32.totalorder %s21, 0
      %p56 = por %p54, %p55
      %p57 = scmp.ne.s32.totalorder %s43, %s44
      %p58 = scmp.eq.s32.totalorder %s22, 1
      %p59 = por %p57, %p58
      %p61 = scmp.ne.s32.totalorder %s44, %s60
      %p62 = scmp.eq.s32.totalorder %s22, 0
      %p63 = por %p61, %p62
      %s64 = ssub.s32 %s24, %s31
      %p65 = scmp.eq.s32.totalorder %s64, 0
      %s67 = sadd.s32 %s66, 1
      %s68 = scalar_select %p65, %s66, %s67
      %p71 = pneg %p65
      %p72 = scmp.eq.s32.totalorder %s16, 1
      %p73 = por %p71, %p72
      %p74 = scmp.ne.s32.totalorder %s66, %s69
      %p75 = scmp.eq.s32.totalorder %s16, 0
      %p76 = por %p74, %p75
      %p77 = scmp.ne.s32.totalorder %s66, %s69
      %p78 = scmp.eq.s32.totalorder %s21, 1
      %p79 = por %p77, %p78
      %p80 = scmp.ne.s32.totalorder %s69, %s70
      %p81 = scmp.eq.s32.totalorder %s21, 0
      %p82 = por %p80, %p81
      %p83 = scmp.ne.s32.totalorder %s69, %s70
      %p84 = scmp.eq.s32.totalorder %s22, 1
      %p85 = por %p83, %p84
      %p87 = scmp.ne.s32.totalorder %s70, %s86
      %p88 = scmp.eq.s32.totalorder %s22, 0
      %p89 = por %p87, %p88
      %s90 = ssub.s32 %s24, %s31
      %p91 = scmp.eq.s32.totalorder %s90, 0
      %s93 = sadd.s32 %s92, 1
      %s94 = scalar_select %p91, %s92, %s93
      %p97 = pneg %p91
      %p98 = scmp.eq.s32.totalorder %s16, 1
      %p99 = por %p97, %p98
      %p100 = scmp.ne.s32.totalorder %s92, %s95
      %p101 = scmp.eq.s32.totalorder %s16, 0
      %p102 = por %p100, %p101
      %p103 = scmp.ne.s32.totalorder %s92, %s95
      %p104 = scmp.eq.s32.totalorder %s21, 1
      %p105 = por %p103, %p104
      %p106 = scmp.ne.s32.totalorder %s95, %s96
      %p107 = scmp.eq.s32.totalorder %s21, 0
      %p108 = por %p106, %p107
      %p109 = scmp.ne.s32.totalorder %s95, %s96
      %p110 = scmp.eq.s32.totalorder %s22, 1
      %p111 = por %p109, %p110
      %p113 = scmp.ne.s32.totalorder %s96, %s112
      %p114 = scmp.eq.s32.totalorder %s22, 0
      %p115 = por %p113, %p114
      %s116 = ssub.s32 %s23, %s35
      %s117 = ssub.s32 %s24, %s31
      %s118 = sor.u32 %s116, %s117
      %p119 = scmp.eq.s32.totalorder %s118, 0
      %s121 = sadd.s32 %s120, 1
      %s122 = scalar_select %p119, %s120, %s121
      %p125 = pneg %p119
      %p126 = scmp.eq.s32.totalorder %s16, 1
      %p127 = por %p125, %p126
      %p128 = scmp.ne.s32.totalorder %s120, %s123
      %p129 = scmp.eq.s32.totalorder %s16, 0
      %p130 = por %p128, %p129
      %p131 = scmp.ne.s32.totalorder %s120, %s123
      %p132 = scmp.eq.s32.totalorder %s21, 1
      %p133 = por %p131, %p132
      %p134 = scmp.ne.s32.totalorder %s123, %s124
      %p135 = scmp.eq.s32.totalorder %s21, 0
      %p136 = por %p134, %p135
      %p137 = scmp.ne.s32.totalorder %s123, %s124
      %p138 = scmp.eq.s32.totalorder %s22, 1
      %p139 = por %p137, %p138
      %p141 = scmp.ne.s32.totalorder %s124, %s140
      %p142 = scmp.eq.s32.totalorder %s22, 0
      %p143 = por %p141, %p142
      %p144 = scmp.le.s32.totalorder 1, %s16
      %p145 = scmp.lt.s32.totalorder %s16, 3
      %p146 = pnand %p144, %p145
      %p147 = pneg %p146
      // Predicated region
      $region9: #{tpu_custom_call.1} parent=5 // pred_check
        _
      $region10: #{tpu_custom_call.1} parent=5 // pred_check_branch
        %149 = sbr.rel (%p146) target = $region12
      $region11: #{tpu_custom_call.1} parent=5 // pred_region
        %s150 = ssub.s32 %s16, 1
        // Predicated region
        $region13: #{tpu_custom_call.1} parent=11 // pred_check
          %p151 = pneg %p82
        $region14: #{tpu_custom_call.1} parent=11 // pred_check_branch
          %153 = sbr.rel (%p151) target = $region16
        $region15: #{tpu_custom_call.1} parent=11 // pred_region
          %s155 = ssub.s32 256, 256
          %156 = vsyncadd [#allocation6], %s155
          %s157 = smul.addr %s26, 128
          %s158 = scalar_lea.hbm %s1, %s157
          %s159 = sshll.u32 [#allocation5], 4
          %s160 = int_to_ptr.vmem [resolvable:$true] %s159
          %165 = dma.hbm_to_vmem [thread:$0]  %s158, 256, %s160, [#allocation6], 128, 128, 8
        $region16: #{tpu_custom_call.1} parent=11 // pred_fallthru
          _
        // Predicated region
        $region17: #{tpu_custom_call.1} parent=11 // pred_check
          %p166 = pneg %p108
        $region18: #{tpu_custom_call.1} parent=11 // pred_check_branch
          %168 = sbr.rel (%p166) target = $region20
        $region19: #{tpu_custom_call.1} parent=11 // pred_region
          %s170 = ssub.s32 256, 256
          %171 = vsyncadd [#allocation6], %s170
          %s172 = smul.addr %s26, 128
          %s173 = scalar_lea.hbm %s2, %s172
          %s174 = sshll.u32 [#allocation7], 4
          %s175 = int_to_ptr.vmem [resolvable:$true] %s174
          %180 = dma.hbm_to_vmem [thread:$0]  %s173, 256, %s175, [#allocation6], 128, 128, 8
        $region20: #{tpu_custom_call.1} parent=11 // pred_fallthru
          _
      $region12: #{tpu_custom_call.1} parent=5 // pred_fallthru
        _
      %p181 = scmp.lt.s32.totalorder %s16, 2
      // Predicated region
      $region21: #{tpu_custom_call.1} parent=5 // pred_check
        %p182 = pneg %p181
      $region22: #{tpu_custom_call.1} parent=5 // pred_check_branch
        %184 = sbr.rel (%p182) target = $region24
      $region23: #{tpu_custom_call.1} parent=5 // pred_region
        // Predicated region
        $region25: #{tpu_custom_call.1} parent=23 // pred_check
          %p185 = pneg %p50
        $region26: #{tpu_custom_call.1} parent=23 // pred_check_branch
          %187 = sbr.rel (%p185) target = $region28
        $region27: #{tpu_custom_call.1} parent=23 // pred_region
          %s188 = sand.u32 %s40, 1
          %s189 = scalar_lea.sflag [#allocation3], %s188
          %s190 = sand.u32 %s40, 1
          %s191 = smul.addr %s190, 256
          %s192 = scalar_lea.vmem [#allocation2], %s191
          %s194 = ssub.s32 4096, 4096
          %195 = vsyncadd %s189, %s194
          %s196 = smul.addr %s23, 32
          %s197 = sadd.s32 %s24, %s196
          %s198 = smul.addr %s197, 128
          %s199 = scalar_lea.hbm %s0, %s198
          %s200 = sshll.u32 %s192, 4
          %s201 = int_to_ptr.vmem [resolvable:$true] %s200
          %206 = dma.hbm_to_vmem [thread:$0]  %s199, 4096, %s201, %s189, 128, 128, 8
        $region28: #{tpu_custom_call.1} parent=23 // pred_fallthru
          _
      $region24: #{tpu_custom_call.1} parent=5 // pred_fallthru
        _
      %p207 = scmp.le.s32.totalorder 1, %s16
      %p208 = scmp.lt.s32.totalorder %s16, 3
      %p209 = pnand %p207, %p208
      %p210 = pneg %p209
      // Predicated region
      $region29: #{tpu_custom_call.1} parent=5 // pred_check
        _
      $region30: #{tpu_custom_call.1} parent=5 // pred_check_branch
        %212 = sbr.rel (%p209) target = $region32
      $region31: #{tpu_custom_call.1} parent=5 // pred_region
        %s213 = ssub.s32 %s16, 1
        %s214 = sand.u32 %s43, 1
        %s215 = scalar_lea.sflag [#allocation3], %s214
        %s216 = sand.u32 %s43, 1
        %s217 = smul.addr %s216, 256
        %s218 = scalar_lea.vmem [#allocation2], %s217
        // Predicated region
        $region33: #{tpu_custom_call.1} parent=31 // pred_check
          %p219 = pneg %p56
        $region34: #{tpu_custom_call.1} parent=31 // pred_check_branch
          %221 = sbr.rel (%p219) target = $region36
        $region35: #{tpu_custom_call.1} parent=31 // pred_region
          %222 = dma.done %s215, 4096
        $region36: #{tpu_custom_call.1} parent=31 // pred_fallthru
          _
        // Predicated region
        $region37: #{tpu_custom_call.1} parent=31 // pred_check
          %p223 = pneg %p82
        $region38: #{tpu_custom_call.1} parent=31 // pred_check_branch
          %225 = sbr.rel (%p223) target = $region40
        $region39: #{tpu_custom_call.1} parent=31 // pred_region
          %226 = dma.done [#allocation6], 256
        $region40: #{tpu_custom_call.1} parent=31 // pred_fallthru
          _
        // Predicated region
        $region41: #{tpu_custom_call.1} parent=31 // pred_check
          %p227 = pneg %p108
        $region42: #{tpu_custom_call.1} parent=31 // pred_check_branch
          %229 = sbr.rel (%p227) target = $region44
        $region43: #{tpu_custom_call.1} parent=31 // pred_region
          %230 = dma.done [#allocation6], 256
        $region44: #{tpu_custom_call.1} parent=31 // pred_fallthru
          _
        %s231 = sand.u32 %s43, 1
        %s232 = scalar_lea.sflag [#allocation3], %s231
        %s233 = sand.u32 %s43, 1
        %s234 = smul.addr %s233, 256
        %s235 = scalar_lea.vmem [#allocation2], %s234
        %p236 = pneg %p56
        %p237 = pneg %p53
        %p238 = pneg %p82
        %p239 = pneg %p79
        %p240 = pneg %p108
        %p241 = pneg %p105
        %p242 = pneg %p136
        %p243 = pneg %p133
        %s244 = sand.u32 %s123, 1
        %s245 = scalar_lea.sflag [#allocation4], %s244
        %s246 = sand.u32 %s123, 1
        %s247 = smul.addr %s246, 256
        %s248 = scalar_lea.vmem [#allocation8], %s247
        %v249 = vld [vmem:[%s218] sm:$0xff]
        %v250 = vld [vmem:[%s218 + $0x8] sm:$0xff]
        %v251 = vld [vmem:[%s218 + $0x10] sm:$0xff]
        %v252 = vld [vmem:[%s218 + $0x18] sm:$0xff]
        %v253 = vld [vmem:[%s218 + $0x20] sm:$0xff]
        %v254 = vld [vmem:[%s218 + $0x28] sm:$0xff]
        %v255 = vld [vmem:[%s218 + $0x30] sm:$0xff]
        %v256 = vld [vmem:[%s218 + $0x38] sm:$0xff]
        %v257 = vld [vmem:[%s218 + $0x40] sm:$0xff]
        %v258 = vld [vmem:[%s218 + $0x48] sm:$0xff]
        %v259 = vld [vmem:[%s218 + $0x50] sm:$0xff]
        %v260 = vld [vmem:[%s218 + $0x58] sm:$0xff]
        %v261 = vld [vmem:[%s218 + $0x60] sm:$0xff]
        %v262 = vld [vmem:[%s218 + $0x68] sm:$0xff]
        %v263 = vld [vmem:[%s218 + $0x70] sm:$0xff]
        %v264 = vld [vmem:[%s218 + $0x78] sm:$0xff]
        %v265 = vld [vmem:[%s218 + $0x80] sm:$0xff]
        %v266 = vld [vmem:[%s218 + $0x88] sm:$0xff]
        %v267 = vld [vmem:[%s218 + $0x90] sm:$0xff]
        %v268 = vld [vmem:[%s218 + $0x98] sm:$0xff]
        %v269 = vld [vmem:[%s218 + $0xa0] sm:$0xff]
        %v270 = vld [vmem:[%s218 + $0xa8] sm:$0xff]
        %v271 = vld [vmem:[%s218 + $0xb0] sm:$0xff]
        %v272 = vld [vmem:[%s218 + $0xb8] sm:$0xff]
        %v273 = vld [vmem:[%s218 + $0xc0] sm:$0xff]
        %v274 = vld [vmem:[%s218 + $0xc8] sm:$0xff]
        %v275 = vld [vmem:[%s218 + $0xd0] sm:$0xff]
        %v276 = vld [vmem:[%s218 + $0xd8] sm:$0xff]
        %v277 = vld [vmem:[%s218 + $0xe0] sm:$0xff]
        %v278 = vld [vmem:[%s218 + $0xe8] sm:$0xff]
        %v279 = vld [vmem:[%s218 + $0xf0] sm:$0xff]
        %v280 = vld [vmem:[%s218 + $0xf8] sm:$0xff]
        %v281 = vld [vmem:[#allocation5] sm:$0xff]
        %v282 = vld [vmem:[#allocation5 + $0x8] sm:$0xff]
        %v283 = vld [vmem:[#allocation7] sm:$0xff]
        %v284 = vld [vmem:[#allocation7 + $0x8] sm:$0xff]
        %v285 = vmul.f32 %v249, %v281
        %v286 = vmul.f32 %v250, %v282
        %v287 = vmul.f32 %v251, %v281
        %v288 = vmul.f32 %v252, %v282
        %v289 = vmul.f32 %v253, %v281
        %v290 = vmul.f32 %v254, %v282
        %v291 = vmul.f32 %v255, %v281
        %v292 = vmul.f32 %v256, %v282
        %v293 = vmul.f32 %v257, %v281
        %v294 = vmul.f32 %v258, %v282
        %v295 = vmul.f32 %v259, %v281
        %v296 = vmul.f32 %v260, %v282
        %v297 = vmul.f32 %v261, %v281
        %v298 = vmul.f32 %v262, %v282
        %v299 = vmul.f32 %v263, %v281
        %v300 = vmul.f32 %v264, %v282
        %v301 = vmul.f32 %v265, %v281
        %v302 = vmul.f32 %v266, %v282
        %v303 = vmul.f32 %v267, %v281
        %v304 = vmul.f32 %v268, %v282
        %v305 = vmul.f32 %v269, %v281
        %v306 = vmul.f32 %v270, %v282
        %v307 = vmul.f32 %v271, %v281
        %v308 = vmul.f32 %v272, %v282
        %v309 = vmul.f32 %v273, %v281
        %v310 = vmul.f32 %v274, %v282
        %v311 = vmul.f32 %v275, %v281
        %v312 = vmul.f32 %v276, %v282
        %v313 = vmul.f32 %v277, %v281
        %v314 = vmul.f32 %v278, %v282
        %v315 = vmul.f32 %v279, %v281
        %v316 = vmul.f32 %v280, %v282
        %v317 = vadd.f32 %v285, %v286
        %v318 = vrot.slane %v317, 4
        %v319 = vadd.f32 %v317, %v318
        %v320 = vrot.slane %v319, 2
        %v321 = vadd.f32 %v319, %v320
        %v322 = vrot.slane %v321, 1
        %v323 = vadd.f32 %v321, %v322
        %v324 = vadd.f32 %v287, %v288
        %v325 = vrot.slane %v324, 4
        %v326 = vadd.f32 %v324, %v325
        %v327 = vrot.slane %v326, 2
        %v328 = vadd.f32 %v326, %v327
        %v329 = vrot.slane %v328, 1
        %v330 = vadd.f32 %v328, %v329
        %v331 = vadd.f32 %v289, %v290
        %v332 = vrot.slane %v331, 4
        %v333 = vadd.f32 %v331, %v332
        %v334 = vrot.slane %v333, 2
        %v335 = vadd.f32 %v333, %v334
        %v336 = vrot.slane %v335, 1
        %v337 = vadd.f32 %v335, %v336
        %v338 = vadd.f32 %v291, %v292
        %v339 = vrot.slane %v338, 4
        %v340 = vadd.f32 %v338, %v339
        %v341 = vrot.slane %v340, 2
        %v342 = vadd.f32 %v340, %v341
        %v343 = vrot.slane %v342, 1
        %v344 = vadd.f32 %v342, %v343
        %v345 = vadd.f32 %v293, %v294
        %v346 = vrot.slane %v345, 4
        %v347 = vadd.f32 %v345, %v346
        %v348 = vrot.slane %v347, 2
        %v349 = vadd.f32 %v347, %v348
        %v350 = vrot.slane %v349, 1
        %v351 = vadd.f32 %v349, %v350
        %v352 = vadd.f32 %v295, %v296
        %v353 = vrot.slane %v352, 4
        %v354 = vadd.f32 %v352, %v353
        %v355 = vrot.slane %v354, 2
        %v356 = vadd.f32 %v354, %v355
        %v357 = vrot.slane %v356, 1
        %v358 = vadd.f32 %v356, %v357
        %v359 = vadd.f32 %v297, %v298
        %v360 = vrot.slane %v359, 4
        %v361 = vadd.f32 %v359, %v360
        %v362 = vrot.slane %v361, 2
        %v363 = vadd.f32 %v361, %v362
        %v364 = vrot.slane %v363, 1
        %v365 = vadd.f32 %v363, %v364
        %v366 = vadd.f32 %v299, %v300
        %v367 = vrot.slane %v366, 4
        %v368 = vadd.f32 %v366, %v367
        %v369 = vrot.slane %v368, 2
        %v370 = vadd.f32 %v368, %v369
        %v371 = vrot.slane %v370, 1
        %v372 = vadd.f32 %v370, %v371
        %v373 = vadd.f32 %v301, %v302
        %v374 = vrot.slane %v373, 4
        %v375 = vadd.f32 %v373, %v374
        %v376 = vrot.slane %v375, 2
        %v377 = vadd.f32 %v375, %v376
        %v378 = vrot.slane %v377, 1
        %v379 = vadd.f32 %v377, %v378
        %v380 = vadd.f32 %v303, %v304
        %v381 = vrot.slane %v380, 4
        %v382 = vadd.f32 %v380, %v381
        %v383 = vrot.slane %v382, 2
        %v384 = vadd.f32 %v382, %v383
        %v385 = vrot.slane %v384, 1
        %v386 = vadd.f32 %v384, %v385
        %v387 = vadd.f32 %v305, %v306
        %v388 = vrot.slane %v387, 4
        %v389 = vadd.f32 %v387, %v388
        %v390 = vrot.slane %v389, 2
        %v391 = vadd.f32 %v389, %v390
        %v392 = vrot.slane %v391, 1
        %v393 = vadd.f32 %v391, %v392
        %v394 = vadd.f32 %v307, %v308
        %v395 = vrot.slane %v394, 4
        %v396 = vadd.f32 %v394, %v395
        %v397 = vrot.slane %v396, 2
        %v398 = vadd.f32 %v396, %v397
        %v399 = vrot.slane %v398, 1
        %v400 = vadd.f32 %v398, %v399
        %v401 = vadd.f32 %v309, %v310
        %v402 = vrot.slane %v401, 4
        %v403 = vadd.f32 %v401, %v402
        %v404 = vrot.slane %v403, 2
        %v405 = vadd.f32 %v403, %v404
        %v406 = vrot.slane %v405, 1
        %v407 = vadd.f32 %v405, %v406
        %v408 = vadd.f32 %v311, %v312
        %v409 = vrot.slane %v408, 4
        %v410 = vadd.f32 %v408, %v409
        %v411 = vrot.slane %v410, 2
        %v412 = vadd.f32 %v410, %v411
        %v413 = vrot.slane %v412, 1
        %v414 = vadd.f32 %v412, %v413
        %v415 = vadd.f32 %v313, %v314
        %v416 = vrot.slane %v415, 4
        %v417 = vadd.f32 %v415, %v416
        %v418 = vrot.slane %v417, 2
        %v419 = vadd.f32 %v417, %v418
        %v420 = vrot.slane %v419, 1
        %v421 = vadd.f32 %v419, %v420
        %v422 = vadd.f32 %v315, %v316
        %v423 = vrot.slane %v422, 4
        %v424 = vadd.f32 %v422, %v423
        %v425 = vrot.slane %v424, 2
        %v426 = vadd.f32 %v424, %v425
        %v427 = vrot.slane %v426, 1
        %v428 = vadd.f32 %v426, %v427
        %v431 = vcombine.high %v283, %v283
        %v433 = vunpack.c.l.s4 1966171168
        %v434 = vunpack.c.0.s8 %v433
        %v435 = vlaneseq
        %v436 = vshrl.u32 %v435, 7
        %v437 = vsub.s32 %v434, %v436
        %v438 = vrot.slane %v283, %v437
        %v440 = vunpack.c.l.s4 1966171168
        %v441 = vunpack.c.0.s8 %v440
        %v442 = vlaneseq
        %v443 = vshrl.u32 %v442, 7
        %v444 = vsub.s32 %v441, %v443
        %v445 = vrot.slane %v431, %v444
        %v446 = vcombine.high %v438, %v438
        %v447 = vcombine.high %v445, %v445
        %v449 = vunpack.c.l.s4 1966171168
        %v450 = vunpack.c.0.s8 %v449
        %v451 = vlaneseq
        %v452 = vshrl.u32 %v451, 7
        %v453 = vsub.s32 %v450, %v452
        %v454 = vrot.slane %v438, %v453
        %v456 = vunpack.c.l.s4 1966171168
        %v457 = vunpack.c.0.s8 %v456
        %v458 = vlaneseq
        %v459 = vshrl.u32 %v458, 7
        %v460 = vsub.s32 %v457, %v459
        %v461 = vrot.slane %v445, %v460
        %v463 = vunpack.c.l.s4 1966171168
        %v464 = vunpack.c.0.s8 %v463
        %v465 = vlaneseq
        %v466 = vshrl.u32 %v465, 7
        %v467 = vsub.s32 %v464, %v466
        %v468 = vrot.slane %v446, %v467
        %v470 = vunpack.c.l.s4 1966171168
        %v471 = vunpack.c.0.s8 %v470
        %v472 = vlaneseq
        %v473 = vshrl.u32 %v472, 7
        %v474 = vsub.s32 %v471, %v473
        %v475 = vrot.slane %v447, %v474
        %v476 = vcombine.high %v454, %v454
        %v477 = vcombine.high %v461, %v461
        %v478 = vcombine.high %v468, %v468
        %v479 = vcombine.high %v475, %v475
        %v480 = vcombine.high %v284, %v284
        %v482 = vunpack.c.l.s4 1966171168
        %v483 = vunpack.c.0.s8 %v482
        %v484 = vlaneseq
        %v485 = vshrl.u32 %v484, 7
        %v486 = vsub.s32 %v483, %v485
        %v487 = vrot.slane %v284, %v486
        %v489 = vunpack.c.l.s4 1966171168
        %v490 = vunpack.c.0.s8 %v489
        %v491 = vlaneseq
        %v492 = vshrl.u32 %v491, 7
        %v493 = vsub.s32 %v490, %v492
        %v494 = vrot.slane %v480, %v493
        %v495 = vcombine.high %v487, %v487
        %v496 = vcombine.high %v494, %v494
        %v498 = vunpack.c.l.s4 1966171168
        %v499 = vunpack.c.0.s8 %v498
        %v500 = vlaneseq
        %v501 = vshrl.u32 %v500, 7
        %v502 = vsub.s32 %v499, %v501
        %v503 = vrot.slane %v487, %v502
        %v505 = vunpack.c.l.s4 1966171168
        %v506 = vunpack.c.0.s8 %v505
        %v507 = vlaneseq
        %v508 = vshrl.u32 %v507, 7
        %v509 = vsub.s32 %v506, %v508
        %v510 = vrot.slane %v494, %v509
        %v512 = vunpack.c.l.s4 1966171168
        %v513 = vunpack.c.0.s8 %v512
        %v514 = vlaneseq
        %v515 = vshrl.u32 %v514, 7
        %v516 = vsub.s32 %v513, %v515
        %v517 = vrot.slane %v495, %v516
        %v519 = vunpack.c.l.s4 1966171168
        %v520 = vunpack.c.0.s8 %v519
        %v521 = vlaneseq
        %v522 = vshrl.u32 %v521, 7
        %v523 = vsub.s32 %v520, %v522
        %v524 = vrot.slane %v496, %v523
        %v525 = vcombine.high %v503, %v503
        %v526 = vcombine.high %v510, %v510
        %v527 = vcombine.high %v517, %v517
        %v528 = vcombine.high %v524, %v524
        %v529 = vlaneseq
        %v530 = vshrl.u32 %v529, 7
        %v531 = vsub.s32 0, %v530
        %v532 = vrot.slane %v454, %v531
        %v533 = vlaneseq
        %v534 = vshrl.u32 %v533, 7
        %v535 = vsub.s32 0, %v534
        %v536 = vrot.slane %v468, %v535
        %v537 = vlaneseq
        %v538 = vshrl.u32 %v537, 7
        %v539 = vsub.s32 0, %v538
        %v540 = vrot.slane %v476, %v539
        %v541 = vlaneseq
        %v542 = vshrl.u32 %v541, 7
        %v543 = vsub.s32 0, %v542
        %v544 = vrot.slane %v478, %v543
        %v545 = vlaneseq
        %v546 = vshrl.u32 %v545, 7
        %v547 = vsub.s32 0, %v546
        %v548 = vrot.slane %v461, %v547
        %v549 = vlaneseq
        %v550 = vshrl.u32 %v549, 7
        %v551 = vsub.s32 0, %v550
        %v552 = vrot.slane %v475, %v551
        %v553 = vlaneseq
        %v554 = vshrl.u32 %v553, 7
        %v555 = vsub.s32 0, %v554
        %v556 = vrot.slane %v477, %v555
        %v557 = vlaneseq
        %v558 = vshrl.u32 %v557, 7
        %v559 = vsub.s32 0, %v558
        %v560 = vrot.slane %v479, %v559
        %v561 = vlaneseq
        %v562 = vshrl.u32 %v561, 7
        %v563 = vsub.s32 0, %v562
        %v564 = vrot.slane %v503, %v563
        %v565 = vlaneseq
        %v566 = vshrl.u32 %v565, 7
        %v567 = vsub.s32 0, %v566
        %v568 = vrot.slane %v517, %v567
        %v569 = vlaneseq
        %v570 = vshrl.u32 %v569, 7
        %v571 = vsub.s32 0, %v570
        %v572 = vrot.slane %v525, %v571
        %v573 = vlaneseq
        %v574 = vshrl.u32 %v573, 7
        %v575 = vsub.s32 0, %v574
        %v576 = vrot.slane %v527, %v575
        %v577 = vlaneseq
        %v578 = vshrl.u32 %v577, 7
        %v579 = vsub.s32 0, %v578
        %v580 = vrot.slane %v510, %v579
        %v581 = vlaneseq
        %v582 = vshrl.u32 %v581, 7
        %v583 = vsub.s32 0, %v582
        %v584 = vrot.slane %v524, %v583
        %v585 = vlaneseq
        %v586 = vshrl.u32 %v585, 7
        %v587 = vsub.s32 0, %v586
        %v588 = vrot.slane %v526, %v587
        %v589 = vlaneseq
        %v590 = vshrl.u32 %v589, 7
        %v591 = vsub.s32 0, %v590
        %v592 = vrot.slane %v528, %v591
        %v609 = vmul.f32 %v249, %v532
        %v610 = vmul.f32 %v250, %v532
        %v611 = vmul.f32 %v251, %v536
        %v612 = vmul.f32 %v252, %v536
        %v613 = vmul.f32 %v253, %v540
        %v614 = vmul.f32 %v254, %v540
        %v615 = vmul.f32 %v255, %v544
        %v616 = vmul.f32 %v256, %v544
        %v617 = vmul.f32 %v257, %v548
        %v618 = vmul.f32 %v258, %v548
        %v619 = vmul.f32 %v259, %v552
        %v620 = vmul.f32 %v260, %v552
        %v621 = vmul.f32 %v261, %v556
        %v622 = vmul.f32 %v262, %v556
        %v623 = vmul.f32 %v263, %v560
        %v624 = vmul.f32 %v264, %v560
        %v625 = vmul.f32 %v265, %v564
        %v626 = vmul.f32 %v266, %v564
        %v627 = vmul.f32 %v267, %v568
        %v628 = vmul.f32 %v268, %v568
        %v629 = vmul.f32 %v269, %v572
        %v630 = vmul.f32 %v270, %v572
        %v631 = vmul.f32 %v271, %v576
        %v632 = vmul.f32 %v272, %v576
        %v633 = vmul.f32 %v273, %v580
        %v634 = vmul.f32 %v274, %v580
        %v635 = vmul.f32 %v275, %v584
        %v636 = vmul.f32 %v276, %v584
        %v637 = vmul.f32 %v277, %v588
        %v638 = vmul.f32 %v278, %v588
        %v639 = vmul.f32 %v279, %v592
        %v640 = vmul.f32 %v280, %v592
        %v641 = vadd.f32 %v609, %v611
        %v642 = vadd.f32 %v641, %v613
        %v643 = vadd.f32 %v642, %v615
        %v644 = vadd.f32 %v643, %v617
        %v645 = vadd.f32 %v644, %v619
        %v646 = vadd.f32 %v645, %v621
        %v647 = vadd.f32 %v646, %v623
        %v648 = vadd.f32 %v647, %v625
        %v649 = vadd.f32 %v648, %v627
        %v650 = vadd.f32 %v649, %v629
        %v651 = vadd.f32 %v650, %v631
        %v652 = vadd.f32 %v651, %v633
        %v653 = vadd.f32 %v652, %v635
        %v654 = vadd.f32 %v653, %v637
        %v655 = vadd.f32 %v654, %v639
        %v656 = vadd.f32 %v610, %v612
        %v657 = vadd.f32 %v656, %v614
        %v658 = vadd.f32 %v657, %v616
        %v659 = vadd.f32 %v658, %v618
        %v660 = vadd.f32 %v659, %v620
        %v661 = vadd.f32 %v660, %v622
        %v662 = vadd.f32 %v661, %v624
        %v663 = vadd.f32 %v662, %v626
        %v664 = vadd.f32 %v663, %v628
        %v665 = vadd.f32 %v664, %v630
        %v666 = vadd.f32 %v665, %v632
        %v667 = vadd.f32 %v666, %v634
        %v668 = vadd.f32 %v667, %v636
        %v669 = vadd.f32 %v668, %v638
        %v670 = vadd.f32 %v669, %v640
        %v671 = vmul.f32 %v323, %v655
        %v672 = vmul.f32 %v323, %v670
        %v673 = vmul.f32 %v330, %v655
        %v674 = vmul.f32 %v330, %v670
        %v675 = vmul.f32 %v337, %v655
        %v676 = vmul.f32 %v337, %v670
        %v677 = vmul.f32 %v344, %v655
        %v678 = vmul.f32 %v344, %v670
        %v679 = vmul.f32 %v351, %v655
        %v680 = vmul.f32 %v351, %v670
        %v681 = vmul.f32 %v358, %v655
        %v682 = vmul.f32 %v358, %v670
        %v683 = vmul.f32 %v365, %v655
        %v684 = vmul.f32 %v365, %v670
        %v685 = vmul.f32 %v372, %v655
        %v686 = vmul.f32 %v372, %v670
        %v687 = vmul.f32 %v379, %v655
        %v688 = vmul.f32 %v379, %v670
        %v689 = vmul.f32 %v386, %v655
        %v690 = vmul.f32 %v386, %v670
        %v691 = vmul.f32 %v393, %v655
        %v692 = vmul.f32 %v393, %v670
        %v693 = vmul.f32 %v400, %v655
        %v694 = vmul.f32 %v400, %v670
        %v695 = vmul.f32 %v407, %v655
        %v696 = vmul.f32 %v407, %v670
        %v697 = vmul.f32 %v414, %v655
        %v698 = vmul.f32 %v414, %v670
        %v699 = vmul.f32 %v421, %v655
        %v700 = vmul.f32 %v421, %v670
        %v701 = vmul.f32 %v428, %v655
        %v702 = vmul.f32 %v428, %v670
        %703 = vst [vmem:[%s248] sm:$0xff] %v671
        %704 = vst [vmem:[%s248 + $0x8] sm:$0xff] %v672
        %705 = vst [vmem:[%s248 + $0x10] sm:$0xff] %v673
        %706 = vst [vmem:[%s248 + $0x18] sm:$0xff] %v674
        %707 = vst [vmem:[%s248 + $0x20] sm:$0xff] %v675
        %708 = vst [vmem:[%s248 + $0x28] sm:$0xff] %v676
        %709 = vst [vmem:[%s248 + $0x30] sm:$0xff] %v677
        %710 = vst [vmem:[%s248 + $0x38] sm:$0xff] %v678
        %711 = vst [vmem:[%s248 + $0x40] sm:$0xff] %v679
        %712 = vst [vmem:[%s248 + $0x48] sm:$0xff] %v680
        %713 = vst [vmem:[%s248 + $0x50] sm:$0xff] %v681
        %714 = vst [vmem:[%s248 + $0x58] sm:$0xff] %v682
        %715 = vst [vmem:[%s248 + $0x60] sm:$0xff] %v683
        %716 = vst [vmem:[%s248 + $0x68] sm:$0xff] %v684
        %717 = vst [vmem:[%s248 + $0x70] sm:$0xff] %v685
        %718 = vst [vmem:[%s248 + $0x78] sm:$0xff] %v686
        %719 = vst [vmem:[%s248 + $0x80] sm:$0xff] %v687
        %720 = vst [vmem:[%s248 + $0x88] sm:$0xff] %v688
        %721 = vst [vmem:[%s248 + $0x90] sm:$0xff] %v689
        %722 = vst [vmem:[%s248 + $0x98] sm:$0xff] %v690
        %723 = vst [vmem:[%s248 + $0xa0] sm:$0xff] %v691
        %724 = vst [vmem:[%s248 + $0xa8] sm:$0xff] %v692
        %725 = vst [vmem:[%s248 + $0xb0] sm:$0xff] %v693
        %726 = vst [vmem:[%s248 + $0xb8] sm:$0xff] %v694
        %727 = vst [vmem:[%s248 + $0xc0] sm:$0xff] %v695
        %728 = vst [vmem:[%s248 + $0xc8] sm:$0xff] %v696
        %729 = vst [vmem:[%s248 + $0xd0] sm:$0xff] %v697
        %730 = vst [vmem:[%s248 + $0xd8] sm:$0xff] %v698
        %731 = vst [vmem:[%s248 + $0xe0] sm:$0xff] %v699
        %732 = vst [vmem:[%s248 + $0xe8] sm:$0xff] %v700
        %733 = vst [vmem:[%s248 + $0xf0] sm:$0xff] %v701
        %734 = vst [vmem:[%s248 + $0xf8] sm:$0xff] %v702
        %s735 = sand.u32 %s123, 1
        %s736 = scalar_lea.sflag [#allocation4], %s735
        %s737 = sand.u32 %s123, 1
        %s738 = smul.addr %s737, 256
        %s739 = scalar_lea.vmem [#allocation8], %s738
        // Predicated region
        $region45: #{tpu_custom_call.1} parent=31 // pred_check
          %p740 = pneg %p133
        $region46: #{tpu_custom_call.1} parent=31 // pred_check_branch
          %742 = sbr.rel (%p740) target = $region48
        $region47: #{tpu_custom_call.1} parent=31 // pred_region
          %s744 = ssub.s32 4096, 4096
          %745 = vsyncadd %s736, %s744
          %s746 = smul.addr %s25, 32
          %s747 = sadd.s32 %s26, %s746
          %s748 = smul.addr %s747, 128
          %s749 = scalar_lea.hbm %s3, %s748
          %s750 = sshll.u32 %s739, 4
          %s751 = int_to_ptr.vmem [resolvable:$true] %s750
          %756 = dma.vmem_to_hbm [thread:$0]  %s751, 4096, %s749, %s736, 128, 128, 8
        $region48: #{tpu_custom_call.1} parent=31 // pred_fallthru
          _
      $region32: #{tpu_custom_call.1} parent=5 // pred_fallthru
        _
      %p757 = scmp.le.s32.totalorder 2, %s16
      // Predicated region
      $region49: #{tpu_custom_call.1} parent=5 // pred_check
        %p758 = pneg %p757
      $region50: #{tpu_custom_call.1} parent=5 // pred_check_branch
        %760 = sbr.rel (%p758) target = $region52
      $region51: #{tpu_custom_call.1} parent=5 // pred_region
        %s761 = ssub.s32 %s16, 2
        // Predicated region
        $region53: #{tpu_custom_call.1} parent=51 // pred_check
          %p762 = pneg %p139
        $region54: #{tpu_custom_call.1} parent=51 // pred_check_branch
          %764 = sbr.rel (%p762) target = $region56
        $region55: #{tpu_custom_call.1} parent=51 // pred_region
          %s765 = sand.u32 %s124, 1
          %s766 = scalar_lea.sflag [#allocation4], %s765
          %s767 = sand.u32 %s124, 1
          %s768 = smul.addr %s767, 256
          %s769 = scalar_lea.vmem [#allocation8], %s768
          %770 = dma.done %s766, 4096
        $region56: #{tpu_custom_call.1} parent=51 // pred_fallthru
          _
      $region52: #{tpu_custom_call.1} parent=5 // pred_fallthru
        _
    $region6: #{tpu_custom_call.1} parent=1 // loop_footer
      %s20 = sadd.s32 1, %s16
    $region7: #{tpu_custom_call.1} parent=1 // loop_footer_branch
      %15 = sbr.rel target = $region3
    $region8: #{tpu_custom_call.1} parent=1 // loop_exit
      _
    %771 = vsyncpa [#allocation3], 1
    %s772 = scalar_lea.sflag [#allocation3], 1
    %773 = vsyncpa %s772, 1
    %774 = vsyncpa [#allocation6], 1
    %775 = vsyncpa [#allocation4], 1
    %s776 = scalar_lea.sflag [#allocation4], 1
    %777 = vsyncpa %s776, 1

</llo_original>
